<compile_context>
chip_gen: v7x
topology: tpu7x:2x2x1
jax: 0.10.0
libtpu: 0.0.40
codegen_flags: <defaults>
</compile_context>

<pallas_src>
import jax
import jax.numpy as jnp
from jax.experimental import pallas as pl
from jax.experimental.pallas import tpu as pltpu


def physics_encoder_kernel(x_ref, w_ref, b_ref, o_ref):
    # x_ref: (tm, K) f32   w_ref: (K, N) bf16   b_ref: (1, N) f32   o_ref: (tm, N) out_dtype
    x = x_ref[...].astype(jnp.bfloat16)          # cast folded into kernel (VPU slack)
    y = jnp.dot(x, w_ref[...], preferred_element_type=jnp.float32)   # MXU, f32 acc
    y = y + b_ref[...]                           # bias broadcast over rows (f32)
    o_ref[...] = (y * jax.nn.sigmoid(y)).astype(o_ref.dtype)         # SiLU, cast on store


def init_physics_encoder_params(w, b):
    """One-time parameter packing (hoisted out of the per-call path).

    w: (in_features, out_features) float weights -> bf16
       (torch nn.Linear.weight is (out_features, in_features): transpose ONCE here)
    b: (out_features,) float bias               -> f32, laid out as (1, N)
    """
    K, N = w.shape
    return w.astype(jnp.bfloat16), b.reshape(1, N).astype(jnp.float32)


def physics_encoder(x, w_bf16, b2d, *, out_dtype=jnp.bfloat16, block_m=256):
    """x: (B, ...) flattened to (B, 1024) f32; w_bf16: (1024, d_model) bf16; b2d: (1, d_model) f32."""
    B = x.shape[0]
    # Same flattening order as torch's x.view(B, -1) on a contiguous NCHW tensor.
    # Reshape only (bitcast); the bf16 cast happens inside the kernel.
    x2d = x.reshape(B, -1)
    K, N = w_bf16.shape
    assert x2d.shape[1] == K, "PhysicsEncoder input dim mismatch"

    out_itemsize = jnp.dtype(out_dtype).itemsize
    cost = pl.CostEstimate(
        flops=2 * B * K * N,
        transcendentals=B * N,                                       # sigmoid exp
        bytes_accessed=K * N * 2 + B * K * 4 + N * 4 + B * N * out_itemsize,
    )

    if B > block_m and B % block_m == 0:
        # Batched path: tile M, keep the weight resident (constant index_map),
        # let megacore shard the parallel M axis (v7x: 2 TCs).
        return pl.pallas_call(
            physics_encoder_kernel,
            out_shape=jax.ShapeDtypeStruct((B, N), out_dtype),
            grid=(B // block_m,),
            in_specs=[
                pl.BlockSpec((block_m, K), lambda i: (i, 0)),
                pl.BlockSpec((K, N), lambda i: (0, 0)),
                pl.BlockSpec((1, N), lambda i: (0, 0)),
            ],
            out_specs=pl.BlockSpec((block_m, N), lambda i: (i, 0)),
            compiler_params=pltpu.CompilerParams(dimension_semantics=("parallel",)),
            cost_estimate=cost,
        )(x2d, w_bf16, b2d)

    # Small-batch path: single block. Total resident data < 1 MiB; a grid or
    # K-split would add fixed overhead with nothing to overlap at M=2.
    return pl.pallas_call(
        physics_encoder_kernel,
        out_shape=jax.ShapeDtypeStruct((B, N), out_dtype),
        in_specs=[
            pl.BlockSpec((B, K), lambda: (0, 0)),
            pl.BlockSpec((K, N), lambda: (0, 0)),
            pl.BlockSpec((1, N), lambda: (0, 0)),
        ],
        out_specs=pl.BlockSpec((B, N), lambda: (0, 0)),
        cost_estimate=cost,
    )(x2d, w_bf16, b2d)


physics_encoder_jit = jax.jit(physics_encoder, static_argnames=("out_dtype", "block_m"))


def _silu_ref_f32(x2d, w, b):
    y = x2d @ w + b
    return y * jax.nn.sigmoid(y)


if __name__ == "__main__":
    key = jax.random.PRNGKey(0)
    k_x, k_w, k_b, k_big = jax.random.split(key, 4)

    B, C, H, W = 2, 4, 16, 16          # flattens to exactly 1024 features
    in_features = C * H * W            # 1024, matches module's input_dim
    d_model = 256                      # config.d_model

    # Deterministic synthetic parameters (shapes as (in_features, out_features)).
    x = jax.random.normal(k_x, (B, C, H, W), dtype=jnp.float32)
    bound = 1.0 / jnp.sqrt(in_features)
    w = jax.random.uniform(k_w, (in_features, d_model), minval=-bound, maxval=bound,
                           dtype=jnp.float32)
    b = jax.random.uniform(k_b, (d_model,), minval=-bound, maxval=bound,
                           dtype=jnp.float32)

    # One-time packing (hoisted out of the per-call path).
    w_bf16, b2d = init_physics_encoder_params(w, b)

    # --- Small-batch (single block) path, B=2 ---
    out = physics_encoder_jit(x, w_bf16, b2d)
    out = jax.block_until_ready(out)
    assert out.shape == (B, d_model)
    assert out.dtype == jnp.bfloat16

    out_f32 = out.astype(jnp.float32)
    # 1) Reference with the same precision recipe (bf16 operands, f32 acc, bf16 store).
    ref_bf16 = jnp.dot(x.reshape(B, -1).astype(jnp.bfloat16), w_bf16,
                       preferred_element_type=jnp.float32) + b2d
    ref_bf16 = (ref_bf16 * jax.nn.sigmoid(ref_bf16)).astype(jnp.bfloat16).astype(jnp.float32)
    assert jnp.allclose(out_f32, ref_bf16, atol=2e-2, rtol=2e-2)
    # 2) Full-f32 reference (loose: bf16 operand + output quantization).
    ref_f32 = _silu_ref_f32(x.reshape(B, -1), w, b)
    assert jnp.allclose(out_f32, ref_f32, atol=5e-2, rtol=5e-2)

    # --- Batched (gridded, parallel M) path, B=512 -> grid=(2,) ---
    B_big = 512
    x_big = jax.random.normal(k_big, (B_big, in_features), dtype=jnp.float32)
    out_big = physics_encoder_jit(x_big, w_bf16, b2d)
    out_big = jax.block_until_ready(out_big)
    assert out_big.shape == (B_big, d_model)
    ref_big = _silu_ref_f32(x_big, w, b)
    assert jnp.allclose(out_big.astype(jnp.float32), ref_big, atol=5e-2, rtol=5e-2)

    print("KERNEL_OK")
</pallas_src>

<mosaic_0001>
module attributes {stable_mosaic.version = 11 : i64} {
  func.func @physics_encoder_kernel(%arg0: memref<2x1024xf32, #tpu.memory_space<vmem>>, %arg1: memref<1024x256xbf16, #tpu.memory_space<vmem>>, %arg2: memref<1x256xf32, #tpu.memory_space<vmem>>, %arg3: memref<2x256xbf16, #tpu.memory_space<vmem>>) attributes {dimension_semantics = [], scalar_prefetch = 0 : i64, scratch_operands = 0 : i64, tpu.core_type = #tpu.core_type<tc>} {
    %c0 = arith.constant 0 : index
    %c0_0 = arith.constant 0 : index
    %0 = vector.load %arg0[%c0, %c0_0] : memref<2x1024xf32, #tpu.memory_space<vmem>>, vector<2x1024xf32>
    %1 = arith.truncf %0 : vector<2x1024xf32> to vector<2x1024xbf16>
    %c0_1 = arith.constant 0 : index
    %c0_2 = arith.constant 0 : index
    %2 = vector.load %arg1[%c0_1, %c0_2] : memref<1024x256xbf16, #tpu.memory_space<vmem>>, vector<1024x256xbf16>
    %cst = arith.constant dense<0.000000e+00> : vector<2x256xf32>
    %3 = tpu.matmul %1, %2, %cst {dimension_numbers = #tpu.dot_dimension_numbers<[1], [0], [0], [1], [0, 0, 1, 1], [], []>} : vector<2x1024xbf16>, vector<1024x256xbf16>, vector<2x256xf32> -> vector<2x256xf32>
    %c0_3 = arith.constant 0 : index
    %c0_4 = arith.constant 0 : index
    %4 = vector.load %arg2[%c0_3, %c0_4] : memref<1x256xf32, #tpu.memory_space<vmem>>, vector<1x256xf32>
    %5 = vector.broadcast %4 : vector<1x256xf32> to vector<2x256xf32>
    %6 = arith.addf %3, %5 : vector<2x256xf32>
    %7 = arith.negf %6 : vector<2x256xf32>
    %8 = math.exp %7 : vector<2x256xf32>
    %cst_5 = arith.constant 1.000000e+00 : f32
    %9 = vector.broadcast %cst_5 : f32 to vector<2x256xf32>
    %10 = arith.addf %9, %8 : vector<2x256xf32>
    %11 = arith.divf %9, %10 : vector<2x256xf32>
    %12 = arith.mulf %6, %11 : vector<2x256xf32>
    %13 = arith.truncf %12 : vector<2x256xf32> to vector<2x256xbf16>
    %c0_6 = arith.constant 0 : index
    %c0_7 = arith.constant 0 : index
    %14 = vector.load %arg3[%c0_6, %c0_7] : memref<2x256xbf16, #tpu.memory_space<vmem>>, vector<2x256xbf16>
    tpu.vector_store %arg3[%c0_6, %c0_7], %13 {strides = array<i32>} : memref<2x256xbf16, #tpu.memory_space<vmem>>, vector<2x256xbf16>,
    return
  }
}

</mosaic_0001>

<llo_original>
// kernel: physics_encoder.1
$region0: #{physics_encoder.1}
  #allocation0 [shape = 'u32[]', space=smem, size = 0x4, offset = 0x4, fixed_abs, tag = 'smem constant byte address 0x4 - core index']
  #allocation1 [shape = 'u32[144,128]{1,0:T(1,128)}', space=vmem, size = 0x12000, scoped, tag = 'internal scratch']
  %s0 = inlined_call_operand.vmem [shape: f32[2,1024], index: 0, kind: input, shape index: {}]
  %s1 = inlined_call_operand.hbm [shape: bf16[1024,256], index: 1, kind: input, shape index: {}]
  %s2 = inlined_call_operand.vmem [shape: f32[1,256], index: 2, kind: input, shape index: {}]
  %s3 = inlined_call_operand.hbm [shape: bf16[2,256], index: 3, kind: output, shape index: {}]
  %s4 = sld [smem:[#allocation0]]
  $region26: #{physics_encoder.1} parent=0
    _
  %s6 = ssub.s32 1, %s4
  %s7 = scalar_select 0, %s6, %s4
  $region1: #{physics_encoder.1} parent=0
    #allocation2 [shape = 'u8[524288]{0}', space=vmem, size = 0x80000, scoped, tag = 'input window, operand 1, single buffered']
    #allocation3 [shape = 's32[1]{0}', space=sflag, size = 0x4, scoped, tag = 'scoped memory for physics_encoder.1']
    #allocation4 [shape = 's32[1]{0}', space=sflag, size = 0x4, scoped, tag = 'scoped memory for physics_encoder.1']
    #allocation5 [shape = 'u8[1024]{0}', space=vmem, size = 0x400, scoped, tag = 'output window, operand 0, single buffered']
    %8 = vsyncpa [#allocation3], 0
    %9 = vsyncpa [#allocation4], 0
    // Predicated region
    $region2: #{physics_encoder.1} parent=1 // pred_check
      _
    $region3: #{physics_encoder.1} parent=1 // pred_check_branch
      %11 = sbr.rel (0) target = $region5
    $region4: #{physics_encoder.1} parent=1 // pred_region
      _
    $region5: #{physics_encoder.1} parent=1 // pred_fallthru
      _
    // Predicated region
    $region6: #{physics_encoder.1} parent=1 // pred_check
      _
    $region7: #{physics_encoder.1} parent=1 // pred_check_branch
      %13 = sbr.rel (0) target = $region9
    $region8: #{physics_encoder.1} parent=1 // pred_region
      %s15 = ssub.s32 16384, 16384
      %16 = vsyncadd [#allocation3], %s15
      %s17 = sshll.u32 [#allocation2], 4
      %s18 = int_to_ptr.vmem [resolvable:$true] %s17
      %23 = dma.hbm_to_vmem [thread:$0]  %s1, 16384, %s18, [#allocation3], 128, 128, 8
    $region9: #{physics_encoder.1} parent=1 // pred_fallthru
      _
    // Predicated region
    $region10: #{physics_encoder.1} parent=1 // pred_check
      _
    $region11: #{physics_encoder.1} parent=1 // pred_check_branch
      %25 = sbr.rel (0) target = $region13
    $region12: #{physics_encoder.1} parent=1 // pred_region
      _
    $region13: #{physics_encoder.1} parent=1 // pred_fallthru
      _
    // Predicated region
    $region14: #{physics_encoder.1} parent=1 // pred_check
      _
    $region15: #{physics_encoder.1} parent=1 // pred_check_branch
      %27 = sbr.rel (0) target = $region17
    $region16: #{physics_encoder.1} parent=1 // pred_region
      %28 = dma.done [#allocation3], 16384
    $region17: #{physics_encoder.1} parent=1 // pred_fallthru
      _
    %v29 = vld [vmem:[%s0] sm:$0xff]
    %v30 = vld [vmem:[%s0 + $0x8] sm:$0xff]
    %v33 = vcombine.high %v29, %v29
    %v35 = vunpack.c.l.s4 1983009808
    %v36 = vunpack.c.0.s8 %v35
    %v37 = vlaneseq
    %v38 = vshrl.u32 %v37, 7
    %v39 = vsub.s32 %v36, %v38
    %v40 = vrot.slane %v29, %v39
    %v42 = vunpack.c.l.s4 1983009808
    %v43 = vunpack.c.0.s8 %v42
    %v44 = vlaneseq
    %v45 = vshrl.u32 %v44, 7
    %v46 = vsub.s32 %v43, %v45
    %v47 = vrot.slane %v33, %v46
    %v48 = vcombine.high %v40, %v40
    %v49 = vcombine.high %v47, %v47
    %v50 = vcombine.high %v30, %v30
    %v52 = vunpack.c.l.s4 1983009808
    %v53 = vunpack.c.0.s8 %v52
    %v54 = vlaneseq
    %v55 = vshrl.u32 %v54, 7
    %v56 = vsub.s32 %v53, %v55
    %v57 = vrot.slane %v30, %v56
    %v59 = vunpack.c.l.s4 1983009808
    %v60 = vunpack.c.0.s8 %v59
    %v61 = vlaneseq
    %v62 = vshrl.u32 %v61, 7
    %v63 = vsub.s32 %v60, %v62
    %v64 = vrot.slane %v50, %v63
    %v65 = vcombine.high %v57, %v57
    %v66 = vcombine.high %v64, %v64
    %v75 = vpack.c.bf16 %v40, %v40
    %v76 = vpack.c.bf16 %v48, %v48
    %v77 = vpack.c.bf16 %v47, %v47
    %v78 = vpack.c.bf16 %v49, %v49
    %v79 = vpack.c.bf16 %v57, %v57
    %v80 = vpack.c.bf16 %v65, %v65
    %v81 = vpack.c.bf16 %v64, %v64
    %v82 = vpack.c.bf16 %v66, %v66
    %v83 = vld [vmem:[#allocation2] sm:$0xff]
    %v84 = vld [vmem:[#allocation2 + $0x8] sm:$0xff]
    %v85 = vld [vmem:[#allocation2 + $0x10] sm:$0xff]
    %v86 = vld [vmem:[#allocation2 + $0x18] sm:$0xff]
    %v87 = vld [vmem:[#allocation2 + $0x20] sm:$0xff]
    %v88 = vld [vmem:[#allocation2 + $0x28] sm:$0xff]
    %v89 = vld [vmem:[#allocation2 + $0x30] sm:$0xff]
    %v90 = vld [vmem:[#allocation2 + $0x38] sm:$0xff]
    %v91 = vld [vmem:[#allocation2 + $0x40] sm:$0xff]
    %v92 = vld [vmem:[#allocation2 + $0x48] sm:$0xff]
    %v93 = vld [vmem:[#allocation2 + $0x50] sm:$0xff]
    %v94 = vld [vmem:[#allocation2 + $0x58] sm:$0xff]
    %v95 = vld [vmem:[#allocation2 + $0x60] sm:$0xff]
    %v96 = vld [vmem:[#allocation2 + $0x68] sm:$0xff]
    %v97 = vld [vmem:[#allocation2 + $0x70] sm:$0xff]
    %v98 = vld [vmem:[#allocation2 + $0x78] sm:$0xff]
    %v99 = vld [vmem:[#allocation2 + $0x80] sm:$0xff]
    %v100 = vld [vmem:[#allocation2 + $0x88] sm:$0xff]
    %v101 = vld [vmem:[#allocation2 + $0x90] sm:$0xff]
    %v102 = vld [vmem:[#allocation2 + $0x98] sm:$0xff]
    %v103 = vld [vmem:[#allocation2 + $0xa0] sm:$0xff]
    %v104 = vld [vmem:[#allocation2 + $0xa8] sm:$0xff]
    %v105 = vld [vmem:[#allocation2 + $0xb0] sm:$0xff]
    %v106 = vld [vmem:[#allocation2 + $0xb8] sm:$0xff]
    %v107 = vld [vmem:[#allocation2 + $0xc0] sm:$0xff]
    %v108 = vld [vmem:[#allocation2 + $0xc8] sm:$0xff]
    %v109 = vld [vmem:[#allocation2 + $0xd0] sm:$0xff]
    %v110 = vld [vmem:[#allocation2 + $0xd8] sm:$0xff]
    %v111 = vld [vmem:[#allocation2 + $0xe0] sm:$0xff]
    %v112 = vld [vmem:[#allocation2 + $0xe8] sm:$0xff]
    %v113 = vld [vmem:[#allocation2 + $0xf0] sm:$0xff]
    %v114 = vld [vmem:[#allocation2 + $0xf8] sm:$0xff]
    %v115 = vld [vmem:[#allocation2 + $0x100] sm:$0xff]
    %v116 = vld [vmem:[#allocation2 + $0x108] sm:$0xff]
    %v117 = vld [vmem:[#allocation2 + $0x110] sm:$0xff]
    %v118 = vld [vmem:[#allocation2 + $0x118] sm:$0xff]
    %v119 = vld [vmem:[#allocation2 + $0x120] sm:$0xff]
    %v120 = vld [vmem:[#allocation2 + $0x128] sm:$0xff]
    %v121 = vld [vmem:[#allocation2 + $0x130] sm:$0xff]
    %v122 = vld [vmem:[#allocation2 + $0x138] sm:$0xff]
    %v123 = vld [vmem:[#allocation2 + $0x140] sm:$0xff]
    %v124 = vld [vmem:[#allocation2 + $0x148] sm:$0xff]
    %v125 = vld [vmem:[#allocation2 + $0x150] sm:$0xff]
    %v126 = vld [vmem:[#allocation2 + $0x158] sm:$0xff]
    %v127 = vld [vmem:[#allocation2 + $0x160] sm:$0xff]
    %v128 = vld [vmem:[#allocation2 + $0x168] sm:$0xff]
    %v129 = vld [vmem:[#allocation2 + $0x170] sm:$0xff]
    %v130 = vld [vmem:[#allocation2 + $0x178] sm:$0xff]
    %v131 = vld [vmem:[#allocation2 + $0x180] sm:$0xff]
    %v132 = vld [vmem:[#allocation2 + $0x188] sm:$0xff]
    %v133 = vld [vmem:[#allocation2 + $0x190] sm:$0xff]
    %v134 = vld [vmem:[#allocation2 + $0x198] sm:$0xff]
    %v135 = vld [vmem:[#allocation2 + $0x1a0] sm:$0xff]
    %v136 = vld [vmem:[#allocation2 + $0x1a8] sm:$0xff]
    %v137 = vld [vmem:[#allocation2 + $0x1b0] sm:$0xff]
    %v138 = vld [vmem:[#allocation2 + $0x1b8] sm:$0xff]
    %v139 = vld [vmem:[#allocation2 + $0x1c0] sm:$0xff]
    %v140 = vld [vmem:[#allocation2 + $0x1c8] sm:$0xff]
    %v141 = vld [vmem:[#allocation2 + $0x1d0] sm:$0xff]
    %v142 = vld [vmem:[#allocation2 + $0x1d8] sm:$0xff]
    %v143 = vld [vmem:[#allocation2 + $0x1e0] sm:$0xff]
    %v144 = vld [vmem:[#allocation2 + $0x1e8] sm:$0xff]
    %v145 = vld [vmem:[#allocation2 + $0x1f0] sm:$0xff]
    %v146 = vld [vmem:[#allocation2 + $0x1f8] sm:$0xff]
    %v147 = vld [vmem:[#allocation2 + $0x200] sm:$0xff]
    %v148 = vld [vmem:[#allocation2 + $0x208] sm:$0xff]
    %v149 = vld [vmem:[#allocation2 + $0x210] sm:$0xff]
    %v150 = vld [vmem:[#allocation2 + $0x218] sm:$0xff]
    %v151 = vld [vmem:[#allocation2 + $0x220] sm:$0xff]
    %v152 = vld [vmem:[#allocation2 + $0x228] sm:$0xff]
    %v153 = vld [vmem:[#allocation2 + $0x230] sm:$0xff]
    %v154 = vld [vmem:[#allocation2 + $0x238] sm:$0xff]
    %v155 = vld [vmem:[#allocation2 + $0x240] sm:$0xff]
    %v156 = vld [vmem:[#allocation2 + $0x248] sm:$0xff]
    %v157 = vld [vmem:[#allocation2 + $0x250] sm:$0xff]
    %v158 = vld [vmem:[#allocation2 + $0x258] sm:$0xff]
    %v159 = vld [vmem:[#allocation2 + $0x260] sm:$0xff]
    %v160 = vld [vmem:[#allocation2 + $0x268] sm:$0xff]
    %v161 = vld [vmem:[#allocation2 + $0x270] sm:$0xff]
    %v162 = vld [vmem:[#allocation2 + $0x278] sm:$0xff]
    %v163 = vld [vmem:[#allocation2 + $0x280] sm:$0xff]
    %v164 = vld [vmem:[#allocation2 + $0x288] sm:$0xff]
    %v165 = vld [vmem:[#allocation2 + $0x290] sm:$0xff]
    %v166 = vld [vmem:[#allocation2 + $0x298] sm:$0xff]
    %v167 = vld [vmem:[#allocation2 + $0x2a0] sm:$0xff]
    %v168 = vld [vmem:[#allocation2 + $0x2a8] sm:$0xff]
    %v169 = vld [vmem:[#allocation2 + $0x2b0] sm:$0xff]
    %v170 = vld [vmem:[#allocation2 + $0x2b8] sm:$0xff]
    %v171 = vld [vmem:[#allocation2 + $0x2c0] sm:$0xff]
    %v172 = vld [vmem:[#allocation2 + $0x2c8] sm:$0xff]
    %v173 = vld [vmem:[#allocation2 + $0x2d0] sm:$0xff]
    %v174 = vld [vmem:[#allocation2 + $0x2d8] sm:$0xff]
    %v175 = vld [vmem:[#allocation2 + $0x2e0] sm:$0xff]
    %v176 = vld [vmem:[#allocation2 + $0x2e8] sm:$0xff]
    %v177 = vld [vmem:[#allocation2 + $0x2f0] sm:$0xff]
    %v178 = vld [vmem:[#allocation2 + $0x2f8] sm:$0xff]
    %v179 = vld [vmem:[#allocation2 + $0x300] sm:$0xff]
    %v180 = vld [vmem:[#allocation2 + $0x308] sm:$0xff]
    %v181 = vld [vmem:[#allocation2 + $0x310] sm:$0xff]
    %v182 = vld [vmem:[#allocation2 + $0x318] sm:$0xff]
    %v183 = vld [vmem:[#allocation2 + $0x320] sm:$0xff]
    %v184 = vld [vmem:[#allocation2 + $0x328] sm:$0xff]
    %v185 = vld [vmem:[#allocation2 + $0x330] sm:$0xff]
    %v186 = vld [vmem:[#allocation2 + $0x338] sm:$0xff]
    %v187 = vld [vmem:[#allocation2 + $0x340] sm:$0xff]
    %v188 = vld [vmem:[#allocation2 + $0x348] sm:$0xff]
    %v189 = vld [vmem:[#allocation2 + $0x350] sm:$0xff]
    %v190 = vld [vmem:[#allocation2 + $0x358] sm:$0xff]
    %v191 = vld [vmem:[#allocation2 + $0x360] sm:$0xff]
    %v192 = vld [vmem:[#allocation2 + $0x368] sm:$0xff]
    %v193 = vld [vmem:[#allocation2 + $0x370] sm:$0xff]
    %v194 = vld [vmem:[#allocation2 + $0x378] sm:$0xff]
    %v195 = vld [vmem:[#allocation2 + $0x380] sm:$0xff]
    %v196 = vld [vmem:[#allocation2 + $0x388] sm:$0xff]
    %v197 = vld [vmem:[#allocation2 + $0x390] sm:$0xff]
    %v198 = vld [vmem:[#allocation2 + $0x398] sm:$0xff]
    %v199 = vld [vmem:[#allocation2 + $0x3a0] sm:$0xff]
    %v200 = vld [vmem:[#allocation2 + $0x3a8] sm:$0xff]
    %v201 = vld [vmem:[#allocation2 + $0x3b0] sm:$0xff]
    %v202 = vld [vmem:[#allocation2 + $0x3b8] sm:$0xff]
    %v203 = vld [vmem:[#allocation2 + $0x3c0] sm:$0xff]
    %v204 = vld [vmem:[#allocation2 + $0x3c8] sm:$0xff]
    %v205 = vld [vmem:[#allocation2 + $0x3d0] sm:$0xff]
    %v206 = vld [vmem:[#allocation2 + $0x3d8] sm:$0xff]
    %v207 = vld [vmem:[#allocation2 + $0x3e0] sm:$0xff]
    %v208 = vld [vmem:[#allocation2 + $0x3e8] sm:$0xff]
    %v209 = vld [vmem:[#allocation2 + $0x3f0] sm:$0xff]
    %v210 = vld [vmem:[#allocation2 + $0x3f8] sm:$0xff]
    %v211 = vld [vmem:[%s2] sm:$0x3]
    %v213 = vlaneseq
    %v214 = vshrl.u32 %v213, 7
    %v215 = vsub.s32 0, %v214
    %v216 = vrot.slane %v211, %v215
    %v217 = vlaneseq
    %v218 = vshrl.u32 %v217, 7
    %v219 = vsub.s32 1, %v218
    %v220 = vrot.slane %v211, %v219
    %v351 = vunpack.c.l.b16 %v83
    %v352 = vunpack.c.h.b16 %v83
    %v353 = vunpack.c.l.b16 %v84
    %v354 = vunpack.c.h.b16 %v84
    %v355 = vunpack.c.l.b16 %v85
    %v356 = vunpack.c.h.b16 %v85
    %v357 = vunpack.c.l.b16 %v86
    %v358 = vunpack.c.h.b16 %v86
    %v359 = vunpack.c.l.b16 %v87
    %v360 = vunpack.c.h.b16 %v87
    %v361 = vunpack.c.l.b16 %v88
    %v362 = vunpack.c.h.b16 %v88
    %v363 = vunpack.c.l.b16 %v89
    %v364 = vunpack.c.h.b16 %v89
    %v365 = vunpack.c.l.b16 %v90
    %v366 = vunpack.c.h.b16 %v90
    %v367 = vunpack.c.l.b16 %v91
    %v368 = vunpack.c.h.b16 %v91
    %v369 = vunpack.c.l.b16 %v92
    %v370 = vunpack.c.h.b16 %v92
    %v371 = vunpack.c.l.b16 %v93
    %v372 = vunpack.c.h.b16 %v93
    %v373 = vunpack.c.l.b16 %v94
    %v374 = vunpack.c.h.b16 %v94
    %v375 = vunpack.c.l.b16 %v95
    %v376 = vunpack.c.h.b16 %v95
    %v377 = vunpack.c.l.b16 %v96
    %v378 = vunpack.c.h.b16 %v96
    %v379 = vunpack.c.l.b16 %v97
    %v380 = vunpack.c.h.b16 %v97
    %v381 = vunpack.c.l.b16 %v98
    %v382 = vunpack.c.h.b16 %v98
    %v383 = vunpack.c.l.b16 %v99
    %v384 = vunpack.c.h.b16 %v99
    %v385 = vunpack.c.l.b16 %v100
    %v386 = vunpack.c.h.b16 %v100
    %v387 = vunpack.c.l.b16 %v101
    %v388 = vunpack.c.h.b16 %v101
    %v389 = vunpack.c.l.b16 %v102
    %v390 = vunpack.c.h.b16 %v102
    %v391 = vunpack.c.l.b16 %v103
    %v392 = vunpack.c.h.b16 %v103
    %v393 = vunpack.c.l.b16 %v104
    %v394 = vunpack.c.h.b16 %v104
    %v395 = vunpack.c.l.b16 %v105
    %v396 = vunpack.c.h.b16 %v105
    %v397 = vunpack.c.l.b16 %v106
    %v398 = vunpack.c.h.b16 %v106
    %v399 = vunpack.c.l.b16 %v107
    %v400 = vunpack.c.h.b16 %v107
    %v401 = vunpack.c.l.b16 %v108
    %v402 = vunpack.c.h.b16 %v108
    %v403 = vunpack.c.l.b16 %v109
    %v404 = vunpack.c.h.b16 %v109
    %v405 = vunpack.c.l.b16 %v110
    %v406 = vunpack.c.h.b16 %v110
    %v407 = vunpack.c.l.b16 %v111
    %v408 = vunpack.c.h.b16 %v111
    %v409 = vunpack.c.l.b16 %v112
    %v410 = vunpack.c.h.b16 %v112
    %v411 = vunpack.c.l.b16 %v113
    %v412 = vunpack.c.h.b16 %v113
    %v413 = vunpack.c.l.b16 %v114
    %v414 = vunpack.c.h.b16 %v114
    %v415 = vunpack.c.l.b16 %v115
    %v416 = vunpack.c.h.b16 %v115
    %v417 = vunpack.c.l.b16 %v116
    %v418 = vunpack.c.h.b16 %v116
    %v419 = vunpack.c.l.b16 %v117
    %v420 = vunpack.c.h.b16 %v117
    %v421 = vunpack.c.l.b16 %v118
    %v422 = vunpack.c.h.b16 %v118
    %v423 = vunpack.c.l.b16 %v119
    %v424 = vunpack.c.h.b16 %v119
    %v425 = vunpack.c.l.b16 %v120
    %v426 = vunpack.c.h.b16 %v120
    %v427 = vunpack.c.l.b16 %v121
    %v428 = vunpack.c.h.b16 %v121
    %v429 = vunpack.c.l.b16 %v122
    %v430 = vunpack.c.h.b16 %v122
    %v431 = vunpack.c.l.b16 %v123
    %v432 = vunpack.c.h.b16 %v123
    %v433 = vunpack.c.l.b16 %v124
    %v434 = vunpack.c.h.b16 %v124
    %v435 = vunpack.c.l.b16 %v125
    %v436 = vunpack.c.h.b16 %v125
    %v437 = vunpack.c.l.b16 %v126
    %v438 = vunpack.c.h.b16 %v126
    %v439 = vunpack.c.l.b16 %v127
    %v440 = vunpack.c.h.b16 %v127
    %v441 = vunpack.c.l.b16 %v128
    %v442 = vunpack.c.h.b16 %v128
    %v443 = vunpack.c.l.b16 %v129
    %v444 = vunpack.c.h.b16 %v129
    %v445 = vunpack.c.l.b16 %v130
    %v446 = vunpack.c.h.b16 %v130
    %v447 = vunpack.c.l.b16 %v131
    %v448 = vunpack.c.h.b16 %v131
    %v449 = vunpack.c.l.b16 %v132
    %v450 = vunpack.c.h.b16 %v132
    %v451 = vunpack.c.l.b16 %v133
    %v452 = vunpack.c.h.b16 %v133
    %v453 = vunpack.c.l.b16 %v134
    %v454 = vunpack.c.h.b16 %v134
    %v455 = vunpack.c.l.b16 %v135
    %v456 = vunpack.c.h.b16 %v135
    %v457 = vunpack.c.l.b16 %v136
    %v458 = vunpack.c.h.b16 %v136
    %v459 = vunpack.c.l.b16 %v137
    %v460 = vunpack.c.h.b16 %v137
    %v461 = vunpack.c.l.b16 %v138
    %v462 = vunpack.c.h.b16 %v138
    %v463 = vunpack.c.l.b16 %v139
    %v464 = vunpack.c.h.b16 %v139
    %v465 = vunpack.c.l.b16 %v140
    %v466 = vunpack.c.h.b16 %v140
    %v467 = vunpack.c.l.b16 %v141
    %v468 = vunpack.c.h.b16 %v141
    %v469 = vunpack.c.l.b16 %v142
    %v470 = vunpack.c.h.b16 %v142
    %v471 = vunpack.c.l.b16 %v143
    %v472 = vunpack.c.h.b16 %v143
    %v473 = vunpack.c.l.b16 %v144
    %v474 = vunpack.c.h.b16 %v144
    %v475 = vunpack.c.l.b16 %v145
    %v476 = vunpack.c.h.b16 %v145
    %v477 = vunpack.c.l.b16 %v146
    %v478 = vunpack.c.h.b16 %v146
    %v479 = vunpack.c.l.b16 %v147
    %v480 = vunpack.c.h.b16 %v147
    %v481 = vunpack.c.l.b16 %v148
    %v482 = vunpack.c.h.b16 %v148
    %v483 = vunpack.c.l.b16 %v149
    %v484 = vunpack.c.h.b16 %v149
    %v485 = vunpack.c.l.b16 %v150
    %v486 = vunpack.c.h.b16 %v150
    %v487 = vunpack.c.l.b16 %v151
    %v488 = vunpack.c.h.b16 %v151
    %v489 = vunpack.c.l.b16 %v152
    %v490 = vunpack.c.h.b16 %v152
    %v491 = vunpack.c.l.b16 %v153
    %v492 = vunpack.c.h.b16 %v153
    %v493 = vunpack.c.l.b16 %v154
    %v494 = vunpack.c.h.b16 %v154
    %v495 = vunpack.c.l.b16 %v155
    %v496 = vunpack.c.h.b16 %v155
    %v497 = vunpack.c.l.b16 %v156
    %v498 = vunpack.c.h.b16 %v156
    %v499 = vunpack.c.l.b16 %v157
    %v500 = vunpack.c.h.b16 %v157
    %v501 = vunpack.c.l.b16 %v158
    %v502 = vunpack.c.h.b16 %v158
    %v503 = vunpack.c.l.b16 %v159
    %v504 = vunpack.c.h.b16 %v159
    %v505 = vunpack.c.l.b16 %v160
    %v506 = vunpack.c.h.b16 %v160
    %v507 = vunpack.c.l.b16 %v161
    %v508 = vunpack.c.h.b16 %v161
    %v509 = vunpack.c.l.b16 %v162
    %v510 = vunpack.c.h.b16 %v162
    %v511 = vunpack.c.l.b16 %v163
    %v512 = vunpack.c.h.b16 %v163
    %v513 = vunpack.c.l.b16 %v164
    %v514 = vunpack.c.h.b16 %v164
    %v515 = vunpack.c.l.b16 %v165
    %v516 = vunpack.c.h.b16 %v165
    %v517 = vunpack.c.l.b16 %v166
    %v518 = vunpack.c.h.b16 %v166
    %v519 = vunpack.c.l.b16 %v167
    %v520 = vunpack.c.h.b16 %v167
    %v521 = vunpack.c.l.b16 %v168
    %v522 = vunpack.c.h.b16 %v168
    %v523 = vunpack.c.l.b16 %v169
    %v524 = vunpack.c.h.b16 %v169
    %v525 = vunpack.c.l.b16 %v170
    %v526 = vunpack.c.h.b16 %v170
    %v527 = vunpack.c.l.b16 %v171
    %v528 = vunpack.c.h.b16 %v171
    %v529 = vunpack.c.l.b16 %v172
    %v530 = vunpack.c.h.b16 %v172
    %v531 = vunpack.c.l.b16 %v173
    %v532 = vunpack.c.h.b16 %v173
    %v533 = vunpack.c.l.b16 %v174
    %v534 = vunpack.c.h.b16 %v174
    %v535 = vunpack.c.l.b16 %v175
    %v536 = vunpack.c.h.b16 %v175
    %v537 = vunpack.c.l.b16 %v176
    %v538 = vunpack.c.h.b16 %v176
    %v539 = vunpack.c.l.b16 %v177
    %v540 = vunpack.c.h.b16 %v177
    %v541 = vunpack.c.l.b16 %v178
    %v542 = vunpack.c.h.b16 %v178
    %v543 = vunpack.c.l.b16 %v179
    %v544 = vunpack.c.h.b16 %v179
    %v545 = vunpack.c.l.b16 %v180
    %v546 = vunpack.c.h.b16 %v180
    %v547 = vunpack.c.l.b16 %v181
    %v548 = vunpack.c.h.b16 %v181
    %v549 = vunpack.c.l.b16 %v182
    %v550 = vunpack.c.h.b16 %v182
    %v551 = vunpack.c.l.b16 %v183
    %v552 = vunpack.c.h.b16 %v183
    %v553 = vunpack.c.l.b16 %v184
    %v554 = vunpack.c.h.b16 %v184
    %v555 = vunpack.c.l.b16 %v185
    %v556 = vunpack.c.h.b16 %v185
    %v557 = vunpack.c.l.b16 %v186
    %v558 = vunpack.c.h.b16 %v186
    %v559 = vunpack.c.l.b16 %v187
    %v560 = vunpack.c.h.b16 %v187
    %v561 = vunpack.c.l.b16 %v188
    %v562 = vunpack.c.h.b16 %v188
    %v563 = vunpack.c.l.b16 %v189
    %v564 = vunpack.c.h.b16 %v189
    %v565 = vunpack.c.l.b16 %v190
    %v566 = vunpack.c.h.b16 %v190
    %v567 = vunpack.c.l.b16 %v191
    %v568 = vunpack.c.h.b16 %v191
    %v569 = vunpack.c.l.b16 %v192
    %v570 = vunpack.c.h.b16 %v192
    %v571 = vunpack.c.l.b16 %v193
    %v572 = vunpack.c.h.b16 %v193
    %v573 = vunpack.c.l.b16 %v194
    %v574 = vunpack.c.h.b16 %v194
    %v575 = vunpack.c.l.b16 %v195
    %v576 = vunpack.c.h.b16 %v195
    %v577 = vunpack.c.l.b16 %v196
    %v578 = vunpack.c.h.b16 %v196
    %v579 = vunpack.c.l.b16 %v197
    %v580 = vunpack.c.h.b16 %v197
    %v581 = vunpack.c.l.b16 %v198
    %v582 = vunpack.c.h.b16 %v198
    %v583 = vunpack.c.l.b16 %v199
    %v584 = vunpack.c.h.b16 %v199
    %v585 = vunpack.c.l.b16 %v200
    %v586 = vunpack.c.h.b16 %v200
    %v587 = vunpack.c.l.b16 %v201
    %v588 = vunpack.c.h.b16 %v201
    %v589 = vunpack.c.l.b16 %v202
    %v590 = vunpack.c.h.b16 %v202
    %v591 = vunpack.c.l.b16 %v203
    %v592 = vunpack.c.h.b16 %v203
    %v593 = vunpack.c.l.b16 %v204
    %v594 = vunpack.c.h.b16 %v204
    %v595 = vunpack.c.l.b16 %v205
    %v596 = vunpack.c.h.b16 %v205
    %v597 = vunpack.c.l.b16 %v206
    %v598 = vunpack.c.h.b16 %v206
    %v599 = vunpack.c.l.b16 %v207
    %v600 = vunpack.c.h.b16 %v207
    %v601 = vunpack.c.l.b16 %v208
    %v602 = vunpack.c.h.b16 %v208
    %v603 = vunpack.c.l.b16 %v209
    %v604 = vunpack.c.h.b16 %v209
    %v605 = vunpack.c.l.b16 %v210
    %v606 = vunpack.c.h.b16 %v210
    %v607 = vpack.c.b16 %v353, %v351
    %v608 = vpack.c.b16 %v354, %v352
    %v609 = vpack.c.b16 %v357, %v355
    %v610 = vpack.c.b16 %v358, %v356
    %v611 = vpack.c.b16 %v361, %v359
    %v612 = vpack.c.b16 %v362, %v360
    %v613 = vpack.c.b16 %v365, %v363
    %v614 = vpack.c.b16 %v366, %v364
    %v615 = vpack.c.b16 %v369, %v367
    %v616 = vpack.c.b16 %v370, %v368
    %v617 = vpack.c.b16 %v373, %v371
    %v618 = vpack.c.b16 %v374, %v372
    %v619 = vpack.c.b16 %v377, %v375
    %v620 = vpack.c.b16 %v378, %v376
    %v621 = vpack.c.b16 %v381, %v379
    %v622 = vpack.c.b16 %v382, %v380
    %v623 = vpack.c.b16 %v385, %v383
    %v624 = vpack.c.b16 %v386, %v384
    %v625 = vpack.c.b16 %v389, %v387
    %v626 = vpack.c.b16 %v390, %v388
    %v627 = vpack.c.b16 %v393, %v391
    %v628 = vpack.c.b16 %v394, %v392
    %v629 = vpack.c.b16 %v397, %v395
    %v630 = vpack.c.b16 %v398, %v396
    %v631 = vpack.c.b16 %v401, %v399
    %v632 = vpack.c.b16 %v402, %v400
    %v633 = vpack.c.b16 %v405, %v403
    %v634 = vpack.c.b16 %v406, %v404
    %v635 = vpack.c.b16 %v409, %v407
    %v636 = vpack.c.b16 %v410, %v408
    %v637 = vpack.c.b16 %v413, %v411
    %v638 = vpack.c.b16 %v414, %v412
    %v639 = vpack.c.b16 %v417, %v415
    %v640 = vpack.c.b16 %v418, %v416
    %v641 = vpack.c.b16 %v421, %v419
    %v642 = vpack.c.b16 %v422, %v420
    %v643 = vpack.c.b16 %v425, %v423
    %v644 = vpack.c.b16 %v426, %v424
    %v645 = vpack.c.b16 %v429, %v427
    %v646 = vpack.c.b16 %v430, %v428
    %v647 = vpack.c.b16 %v433, %v431
    %v648 = vpack.c.b16 %v434, %v432
    %v649 = vpack.c.b16 %v437, %v435
    %v650 = vpack.c.b16 %v438, %v436
    %v651 = vpack.c.b16 %v441, %v439
    %v652 = vpack.c.b16 %v442, %v440
    %v653 = vpack.c.b16 %v445, %v443
    %v654 = vpack.c.b16 %v446, %v444
    %v655 = vpack.c.b16 %v449, %v447
    %v656 = vpack.c.b16 %v450, %v448
    %v657 = vpack.c.b16 %v453, %v451
    %v658 = vpack.c.b16 %v454, %v452
    %v659 = vpack.c.b16 %v457, %v455
    %v660 = vpack.c.b16 %v458, %v456
    %v661 = vpack.c.b16 %v461, %v459
    %v662 = vpack.c.b16 %v462, %v460
    %v663 = vpack.c.b16 %v465, %v463
    %v664 = vpack.c.b16 %v466, %v464
    %v665 = vpack.c.b16 %v469, %v467
    %v666 = vpack.c.b16 %v470, %v468
    %v667 = vpack.c.b16 %v473, %v471
    %v668 = vpack.c.b16 %v474, %v472
    %v669 = vpack.c.b16 %v477, %v475
    %v670 = vpack.c.b16 %v478, %v476
    %v671 = vpack.c.b16 %v481, %v479
    %v672 = vpack.c.b16 %v482, %v480
    %v673 = vpack.c.b16 %v485, %v483
    %v674 = vpack.c.b16 %v486, %v484
    %v675 = vpack.c.b16 %v489, %v487
    %v676 = vpack.c.b16 %v490, %v488
    %v677 = vpack.c.b16 %v493, %v491
    %v678 = vpack.c.b16 %v494, %v492
    %v679 = vpack.c.b16 %v497, %v495
    %v680 = vpack.c.b16 %v498, %v496
    %v681 = vpack.c.b16 %v501, %v499
    %v682 = vpack.c.b16 %v502, %v500
    %v683 = vpack.c.b16 %v505, %v503
    %v684 = vpack.c.b16 %v506, %v504
    %v685 = vpack.c.b16 %v509, %v507
    %v686 = vpack.c.b16 %v510, %v508
    %v687 = vpack.c.b16 %v513, %v511
    %v688 = vpack.c.b16 %v514, %v512
    %v689 = vpack.c.b16 %v517, %v515
    %v690 = vpack.c.b16 %v518, %v516
    %v691 = vpack.c.b16 %v521, %v519
    %v692 = vpack.c.b16 %v522, %v520
    %v693 = vpack.c.b16 %v525, %v523
    %v694 = vpack.c.b16 %v526, %v524
    %v695 = vpack.c.b16 %v529, %v527
    %v696 = vpack.c.b16 %v530, %v528
    %v697 = vpack.c.b16 %v533, %v531
    %v698 = vpack.c.b16 %v534, %v532
    %v699 = vpack.c.b16 %v537, %v535
    %v700 = vpack.c.b16 %v538, %v536
    %v701 = vpack.c.b16 %v541, %v539
    %v702 = vpack.c.b16 %v542, %v540
    %v703 = vpack.c.b16 %v545, %v543
    %v704 = vpack.c.b16 %v546, %v544
    %v705 = vpack.c.b16 %v549, %v547
    %v706 = vpack.c.b16 %v550, %v548
    %v707 = vpack.c.b16 %v553, %v551
    %v708 = vpack.c.b16 %v554, %v552
    %v709 = vpack.c.b16 %v557, %v555
    %v710 = vpack.c.b16 %v558, %v556
    %v711 = vpack.c.b16 %v561, %v559
    %v712 = vpack.c.b16 %v562, %v560
    %v713 = vpack.c.b16 %v565, %v563
    %v714 = vpack.c.b16 %v566, %v564
    %v715 = vpack.c.b16 %v569, %v567
    %v716 = vpack.c.b16 %v570, %v568
    %v717 = vpack.c.b16 %v573, %v571
    %v718 = vpack.c.b16 %v574, %v572
    %v719 = vpack.c.b16 %v577, %v575
    %v720 = vpack.c.b16 %v578, %v576
    %v721 = vpack.c.b16 %v581, %v579
    %v722 = vpack.c.b16 %v582, %v580
    %v723 = vpack.c.b16 %v585, %v583
    %v724 = vpack.c.b16 %v586, %v584
    %v725 = vpack.c.b16 %v589, %v587
    %v726 = vpack.c.b16 %v590, %v588
    %v727 = vpack.c.b16 %v593, %v591
    %v728 = vpack.c.b16 %v594, %v592
    %v729 = vpack.c.b16 %v597, %v595
    %v730 = vpack.c.b16 %v598, %v596
    %v731 = vpack.c.b16 %v601, %v599
    %v732 = vpack.c.b16 %v602, %v600
    %v733 = vpack.c.b16 %v605, %v603
    %v734 = vpack.c.b16 %v606, %v604
    %863 = vmatprep.subr.bf16.mxu0 %v608
    %864 = vmatpush1.bf16.msra.mxu0 %v607
    %865 = vmatprep.subr.bf16.mxu0 %v610
    %866 = vmatpush1.bf16.msra.mxu0 %v609
    %867 = vmatprep.subr.bf16.mxu0 %v612
    %868 = vmatpush1.bf16.msra.mxu0 %v611
    %869 = vmatprep.subr.bf16.mxu0 %v614
    %870 = vmatpush1.bf16.msra.mxu0 %v613
    %871 = vmatprep.subr.bf16.mxu0 %v616
    %872 = vmatpush1.bf16.msra.mxu0 %v615
    %873 = vmatprep.subr.bf16.mxu0 %v618
    %874 = vmatpush1.bf16.msra.mxu0 %v617
    %875 = vmatprep.subr.bf16.mxu0 %v620
    %876 = vmatpush1.bf16.msra.mxu0 %v619
    %877 = vmatprep.subr.bf16.mxu0 %v622
    %878 = vmatpush1.bf16.msra.mxu0 %v621
    %879 = vmatprep.subr.bf16.mxu0 %v624
    %880 = vmatpush1.bf16.msra.mxu0 %v623
    %881 = vmatprep.subr.bf16.mxu0 %v626
    %882 = vmatpush1.bf16.msra.mxu0 %v625
    %883 = vmatprep.subr.bf16.mxu0 %v628
    %884 = vmatpush1.bf16.msra.mxu0 %v627
    %885 = vmatprep.subr.bf16.mxu0 %v630
    %886 = vmatpush1.bf16.msra.mxu0 %v629
    %887 = vmatprep.subr.bf16.mxu0 %v632
    %888 = vmatpush1.bf16.msra.mxu0 %v631
    %889 = vmatprep.subr.bf16.mxu0 %v634
    %890 = vmatpush1.bf16.msra.mxu0 %v633
    %891 = vmatprep.subr.bf16.mxu0 %v636
    %892 = vmatpush1.bf16.msra.mxu0 %v635
    %893 = vmatprep.subr.bf16.mxu0 %v638
    %894 = vmatpush1.bf16.msra.mxu0 %v637
    %895 = vmatprep.mubr.bf16.mxu0 %v76
    %896 = vmatmul.mubr.bf16.gmra.mrb[0].mxu0 %v75
    %v897 = vpop.f32.mrb[0].mxu0
    %v898 = vadd.f32 %v216, %v897
    %v899 = vpop.f32.mrb[0].mxu0
    %v900 = vadd.f32 %v220, %v899
    %v901 = vpop.f32.mrb[0].mxu0
    %v902 = vpop.f32.mrb[0].mxu0
    %903 = vdwg.mxu0
    %904 = vmatprep.subr.bf16.mxu0 %v640
    %905 = vmatpush1.bf16.msra.mxu0 %v639
    %906 = vmatprep.subr.bf16.mxu0 %v642
    %907 = vmatpush1.bf16.msra.mxu0 %v641
    %908 = vmatprep.subr.bf16.mxu0 %v644
    %909 = vmatpush1.bf16.msra.mxu0 %v643
    %910 = vmatprep.subr.bf16.mxu0 %v646
    %911 = vmatpush1.bf16.msra.mxu0 %v645
    %912 = vmatprep.subr.bf16.mxu0 %v648
    %913 = vmatpush1.bf16.msra.mxu0 %v647
    %914 = vmatprep.subr.bf16.mxu0 %v650
    %915 = vmatpush1.bf16.msra.mxu0 %v649
    %916 = vmatprep.subr.bf16.mxu0 %v652
    %917 = vmatpush1.bf16.msra.mxu0 %v651
    %918 = vmatprep.subr.bf16.mxu0 %v654
    %919 = vmatpush1.bf16.msra.mxu0 %v653
    %920 = vmatprep.subr.bf16.mxu0 %v656
    %921 = vmatpush1.bf16.msra.mxu0 %v655
    %922 = vmatprep.subr.bf16.mxu0 %v658
    %923 = vmatpush1.bf16.msra.mxu0 %v657
    %924 = vmatprep.subr.bf16.mxu0 %v660
    %925 = vmatpush1.bf16.msra.mxu0 %v659
    %926 = vmatprep.subr.bf16.mxu0 %v662
    %927 = vmatpush1.bf16.msra.mxu0 %v661
    %928 = vmatprep.subr.bf16.mxu0 %v664
    %929 = vmatpush1.bf16.msra.mxu0 %v663
    %930 = vmatprep.subr.bf16.mxu0 %v666
    %931 = vmatpush1.bf16.msra.mxu0 %v665
    %932 = vmatprep.subr.bf16.mxu0 %v668
    %933 = vmatpush1.bf16.msra.mxu0 %v667
    %934 = vmatprep.subr.bf16.mxu0 %v670
    %935 = vmatpush1.bf16.msra.mxu0 %v669
    %936 = vmatprep.mubr.bf16.mxu0 %v78
    %937 = vmatmul.mubr.bf16.gmra.mrb[0].mxu0 %v77
    %v938 = vpop.f32.mrb[0].mxu0
    %v939 = vadd.f32 %v898, %v938
    %v940 = vpop.f32.mrb[0].mxu0
    %v941 = vadd.f32 %v900, %v940
    %v942 = vpop.f32.mrb[0].mxu0
    %v943 = vpop.f32.mrb[0].mxu0
    %944 = vdwg.mxu0
    %945 = vmatprep.subr.bf16.mxu0 %v672
    %946 = vmatpush1.bf16.msra.mxu0 %v671
    %947 = vmatprep.subr.bf16.mxu0 %v674
    %948 = vmatpush1.bf16.msra.mxu0 %v673
    %949 = vmatprep.subr.bf16.mxu0 %v676
    %950 = vmatpush1.bf16.msra.mxu0 %v675
    %951 = vmatprep.subr.bf16.mxu0 %v678
    %952 = vmatpush1.bf16.msra.mxu0 %v677
    %953 = vmatprep.subr.bf16.mxu0 %v680
    %954 = vmatpush1.bf16.msra.mxu0 %v679
    %955 = vmatprep.subr.bf16.mxu0 %v682
    %956 = vmatpush1.bf16.msra.mxu0 %v681
    %957 = vmatprep.subr.bf16.mxu0 %v684
    %958 = vmatpush1.bf16.msra.mxu0 %v683
    %959 = vmatprep.subr.bf16.mxu0 %v686
    %960 = vmatpush1.bf16.msra.mxu0 %v685
    %961 = vmatprep.subr.bf16.mxu0 %v688
    %962 = vmatpush1.bf16.msra.mxu0 %v687
    %963 = vmatprep.subr.bf16.mxu0 %v690
    %964 = vmatpush1.bf16.msra.mxu0 %v689
    %965 = vmatprep.subr.bf16.mxu0 %v692
    %966 = vmatpush1.bf16.msra.mxu0 %v691
    %967 = vmatprep.subr.bf16.mxu0 %v694
    %968 = vmatpush1.bf16.msra.mxu0 %v693
    %969 = vmatprep.subr.bf16.mxu0 %v696
    %970 = vmatpush1.bf16.msra.mxu0 %v695
    %971 = vmatprep.subr.bf16.mxu0 %v698
    %972 = vmatpush1.bf16.msra.mxu0 %v697
    %973 = vmatprep.subr.bf16.mxu0 %v700
    %974 = vmatpush1.bf16.msra.mxu0 %v699
    %975 = vmatprep.subr.bf16.mxu0 %v702
    %976 = vmatpush1.bf16.msra.mxu0 %v701
    %977 = vmatprep.mubr.bf16.mxu0 %v80
    %978 = vmatmul.mubr.bf16.gmra.mrb[0].mxu0 %v79
    %v979 = vpop.f32.mrb[0].mxu0
    %v980 = vadd.f32 %v939, %v979
    %v981 = vpop.f32.mrb[0].mxu0
    %v982 = vadd.f32 %v941, %v981
    %v983 = vpop.f32.mrb[0].mxu0
    %v984 = vpop.f32.mrb[0].mxu0
    %985 = vdwg.mxu0
    %986 = vmatprep.subr.bf16.mxu0 %v704
    %987 = vmatpush1.bf16.msra.mxu0 %v703
    %988 = vmatprep.subr.bf16.mxu0 %v706
    %989 = vmatpush1.bf16.msra.mxu0 %v705
    %990 = vmatprep.subr.bf16.mxu0 %v708
    %991 = vmatpush1.bf16.msra.mxu0 %v707
    %992 = vmatprep.subr.bf16.mxu0 %v710
    %993 = vmatpush1.bf16.msra.mxu0 %v709
    %994 = vmatprep.subr.bf16.mxu0 %v712
    %995 = vmatpush1.bf16.msra.mxu0 %v711
    %996 = vmatprep.subr.bf16.mxu0 %v714
    %997 = vmatpush1.bf16.msra.mxu0 %v713
    %998 = vmatprep.subr.bf16.mxu0 %v716
    %999 = vmatpush1.bf16.msra.mxu0 %v715
    %1000 = vmatprep.subr.bf16.mxu0 %v718
    %1001 = vmatpush1.bf16.msra.mxu0 %v717
    %1002 = vmatprep.subr.bf16.mxu0 %v720
    %1003 = vmatpush1.bf16.msra.mxu0 %v719
    %1004 = vmatprep.subr.bf16.mxu0 %v722
    %1005 = vmatpush1.bf16.msra.mxu0 %v721
    %1006 = vmatprep.subr.bf16.mxu0 %v724
    %1007 = vmatpush1.bf16.msra.mxu0 %v723
    %1008 = vmatprep.subr.bf16.mxu0 %v726
    %1009 = vmatpush1.bf16.msra.mxu0 %v725
    %1010 = vmatprep.subr.bf16.mxu0 %v728
    %1011 = vmatpush1.bf16.msra.mxu0 %v727
    %1012 = vmatprep.subr.bf16.mxu0 %v730
    %1013 = vmatpush1.bf16.msra.mxu0 %v729
    %1014 = vmatprep.subr.bf16.mxu0 %v732
    %1015 = vmatpush1.bf16.msra.mxu0 %v731
    %1016 = vmatprep.subr.bf16.mxu0 %v734
    %1017 = vmatpush1.bf16.msra.mxu0 %v733
    %1018 = vmatprep.mubr.bf16.mxu0 %v82
    %1019 = vmatmul.mubr.bf16.gmra.mrb[0].mxu0 %v81
    %v1020 = vpop.f32.mrb[0].mxu0
    %v1021 = vadd.f32 %v980, %v1020
    %v1022 = vpop.f32.mrb[0].mxu0
    %v1023 = vadd.f32 %v982, %v1022
    %v1024 = vpop.f32.mrb[0].mxu0
    %v1025 = vpop.f32.mrb[0].mxu0
    %1026 = vdwg.mxu0
    %v1027 = vxor.u32 %v1021, 2147483648
    %v1028 = vxor.u32 %v1023, 2147483648
    %v1029 = vmul.f32 %v1027, 1.442695
    %v1030 = vpow.pop %v1029
    %v1031 = vmul.f32 %v1028, 1.442695
    %v1032 = vpow.pop %v1031
    %v1033 = vadd.f32 %v1030, 1.0
    %v1034 = vadd.f32 %v1032, 1.0
    %v1035 = vrcp.pop %v1033
    %v1036 = vmul.f32 1.0, %v1035
    %v1037 = vrcp.pop %v1034
    %v1038 = vmul.f32 1.0, %v1037
    %v1039 = vmul.f32 %v1021, %v1036
    %v1040 = vmul.f32 %v1023, %v1038
    %v1041 = vpack.c.bf16 %v1039, %v1039
    %v1042 = vpack.c.bf16 %v1040, %v1040
    %v1045 = vcombine.low %v1041, %v1042
    %v1047 = vunpack.c.l.s4 1966171168
    %v1048 = vunpack.c.0.s8 %v1047
    %v1049 = vlaneseq
    %v1050 = vshrl.u32 %v1049, 7
    %v1051 = vsub.s32 %v1048, %v1050
    %v1052 = vrot.slane %v1045, %v1051
    %v1054 = vunpack.c.l.s4 1966171168
    %v1055 = vunpack.c.0.s8 %v1054
    %v1056 = vlaneseq
    %v1057 = vshrl.u32 %v1056, 7
    %v1058 = vsub.s32 %v1055, %v1057
    %v1059 = vrot.slane %v1052, %v1058
    %1061 = vst [vmem:[#allocation5] sm:$0x3] %v1059
    // Predicated region
    $region18: #{physics_encoder.1} parent=1 // pred_check
      _
    $region19: #{physics_encoder.1} parent=1 // pred_check_branch
      %1063 = sbr.rel (0) target = $region21
    $region20: #{physics_encoder.1} parent=1 // pred_region
      %s1065 = ssub.s32 32, 32
      %1066 = vsyncadd [#allocation4], %s1065
      %s1068 = sshll.u32 [#allocation5], 4
      %s1069 = int_to_ptr.vmem [resolvable:$true] %s1068
      %1071 = dma.vmem_to_hbm [thread:$0]  %s1069, 32, %s3, [#allocation4]
    $region21: #{physics_encoder.1} parent=1 // pred_fallthru
      _
    // Predicated region
    $region22: #{physics_encoder.1} parent=1 // pred_check
      _
    $region23: #{physics_encoder.1} parent=1 // pred_check_branch
      %1073 = sbr.rel (0) target = $region25
    $region24: #{physics_encoder.1} parent=1 // pred_region
      %1074 = dma.done [#allocation4], 32
    $region25: #{physics_encoder.1} parent=1 // pred_fallthru
      _
    %1075 = vsyncpa [#allocation3], 1
    %1076 = vsyncpa [#allocation4], 1

</llo_original>
